<compile_context>
chip_gen: v7x
topology: tpu7x:2x2x1
jax: 0.10.0
libtpu: 0.0.40
codegen_flags: <defaults>
</compile_context>

<pallas_src>
import functools

import jax
import jax.numpy as jnp
from jax.experimental import pallas as pl
from jax.experimental.pallas import tpu as pltpu

_LANE = 128
_SUBLANE = 8


def _round_up(x: int, m: int) -> int:
    return (x + m - 1) // m * m


def _cdiv(a: int, b: int) -> int:
    return -(-a // b)


# ----------------------------- Pallas kernel ------------------------------ #
def _critic_kernel(x_ref, a_ref, w1x_ref, w1a_ref, b1_ref,
                   w2_ref, b2_ref, w3r_ref, b3_ref, q_ref):
    cdt = w1x_ref.dtype
    # ---- layer 1: h = relu(x @ W1x + a @ W1a + b1)  (concat fused away) ----
    h = jnp.dot(x_ref[...].astype(cdt), w1x_ref[...],
                preferred_element_type=jnp.float32)
    # action contribution: action_dim is tiny, so do it as unrolled VPU
    # outer-product MACs instead of a sub-8-K matmul (f32, v5e-friendly).
    a_val = a_ref[...].astype(jnp.float32)
    for k in range(a_ref.shape[1]):
        h = h + a_val[:, k:k + 1] * w1a_ref[k:k + 1, :]
    h = jnp.maximum(h + b1_ref[...], 0.0)
    # ---- layer 2: h = relu(h @ W2 + b2) ------------------------------------
    h = jnp.dot(h.astype(w2_ref.dtype), w2_ref[...],
                preferred_element_type=jnp.float32)
    h = jnp.maximum(h + b2_ref[...], 0.0)
    # ---- head: q = h @ w3 + b3 as VPU mul + XLU lane-reduce ---------------
    # -> one useful f32 per row, stored into a (tb, 1) block (no 128-lane
    #    padded output writeback).
    q = jnp.sum(h * w3r_ref[...], axis=-1, keepdims=True) + b3_ref[...]
    q_ref[...] = q


# ----------------------------- parameters --------------------------------- #
def init_critic_params(key, state_dim, action_dim, hidden_sizes):
    """PyTorch-style (uniform +-1/sqrt(fan_in)) init, logical (unpadded) shapes."""
    assert len(hidden_sizes) == 2, "kernel is written for two hidden layers"
    dims = [state_dim + action_dim, hidden_sizes[0], hidden_sizes[1], 1]
    keys = jax.random.split(key, 6)

    def linear(kw, kb, fan_in, fan_out):
        bound = 1.0 / float(fan_in) ** 0.5
        w = jax.random.uniform(kw, (fan_in, fan_out), jnp.float32, -bound, bound)
        b = jax.random.uniform(kb, (1, fan_out), jnp.float32, -bound, bound)
        return w, b

    w1, b1 = linear(keys[0], keys[1], dims[0], dims[1])
    w2, b2 = linear(keys[2], keys[3], dims[1], dims[2])
    w3, b3 = linear(keys[4], keys[5], dims[2], dims[3])
    return dict(w1=w1, b1=b1, w2=w2, b2=b2, w3=w3, b3=b3)


def pack_critic_params(params, state_dim, compute_dtype=jnp.bfloat16):
    """Pack params for the kernel:
      * split W1 into W1x (state rows, MXU/compute_dtype) and W1a (action rows,
        VPU path, f32),
      * zero-pad hidden dims to multiples of 128 (dense vregs / MXU tiles),
      * store the output head as a [1, h2_p] row (w3r) for the lane-reduce,
      * biases stay f32 (elementwise path).
    Zero padding keeps padded hidden units at relu(0)=0, so results are exact
    w.r.t. the unpadded math (up to compute_dtype rounding)."""
    w1, w2, w3 = params["w1"], params["w2"], params["w3"]
    h1, h2 = w1.shape[1], w2.shape[1]
    h1_p, h2_p = _round_up(h1, _LANE), _round_up(h2, _LANE)

    def pad_cols(m, cols, dtype):
        return jnp.pad(m, ((0, 0), (0, cols - m.shape[1]))).astype(dtype)

    return dict(
        w1x=pad_cols(w1[:state_dim], h1_p, compute_dtype),
        w1a=pad_cols(w1[state_dim:], h1_p, jnp.float32),
        b1=pad_cols(params["b1"], h1_p, jnp.float32),
        w2=jnp.pad(w2, ((0, h1_p - h1), (0, h2_p - h2))).astype(compute_dtype),
        b2=pad_cols(params["b2"], h2_p, jnp.float32),
        w3r=pad_cols(w3.T, h2_p, jnp.float32),          # [1, h2_p]
        b3=params["b3"].astype(jnp.float32),            # [1, 1]
    )


# ------------------------------- wrapper ----------------------------------- #
def critic_forward_pallas(x, a, packed, *, block_b=2048):
    """CriticNet_SAC.forward: Q(s, a) -> [B] via one fused Pallas kernel."""
    B, sd = x.shape
    ad = a.shape[1]
    w1x, w1a, b1 = packed["w1x"], packed["w1a"], packed["b1"]
    w2, b2 = packed["w2"], packed["b2"]
    w3r, b3 = packed["w3r"], packed["b3"]
    h1_p, h2_p = w1x.shape[1], w2.shape[1]
    assert w1x.shape[0] == sd and w1a.shape[0] == ad

    # ---- batch tiling -------------------------------------------------------
    bp8 = _round_up(max(B, 1), _SUBLANE)
    if bp8 <= block_b:
        tb, n_tiles = bp8, 1              # single tile: latency-bound small batch
    else:
        n_tiles = _cdiv(bp8, _round_up(block_b, _SUBLANE))
        if n_tiles % 2:
            n_tiles += 1                  # even tile count -> v7x dual-TC balance
        tb = _round_up(_cdiv(bp8, n_tiles), _SUBLANE)
    bp = tb * n_tiles

    if bp != B:                           # row padding only; no lane padding
        x = jnp.pad(x, ((0, bp - B), (0, 0)))
        a = jnp.pad(a, ((0, bp - B), (0, 0)))

    itm_w = w2.dtype.itemsize
    flops = 2 * bp * (sd * h1_p + ad * h1_p + h1_p * h2_p + h2_p)
    bytes_accessed = (bp * (sd + ad) * 4                       # x, a reads
                      + sd * h1_p * w1x.dtype.itemsize         # W1x
                      + ad * h1_p * 4 + h1_p * h2_p * itm_w    # W1a, W2
                      + (h1_p + h2_p + h2_p + 1) * 4           # biases + w3 row
                      + bp * 4)                                # q out (1 f32/row)

    grid_spec = pltpu.PrefetchScalarGridSpec(
        num_scalar_prefetch=0,
        grid=(n_tiles,),
        in_specs=[
            pl.BlockSpec((tb, sd), lambda i: (i, 0)),       # x   (row-blocked)
            pl.BlockSpec((tb, ad), lambda i: (i, 0)),       # a   (row-blocked)
            pl.BlockSpec((sd, h1_p), lambda i: (0, 0)),     # W1x (VMEM-resident)
            pl.BlockSpec((ad, h1_p), lambda i: (0, 0)),     # W1a
            pl.BlockSpec((1, h1_p), lambda i: (0, 0)),      # b1
            pl.BlockSpec((h1_p, h2_p), lambda i: (0, 0)),   # W2
            pl.BlockSpec((1, h2_p), lambda i: (0, 0)),      # b2
            pl.BlockSpec((1, h2_p), lambda i: (0, 0)),      # w3 row
            pl.BlockSpec((1, 1), lambda i: (0, 0)),         # b3
        ],
        out_specs=pl.BlockSpec((tb, 1), lambda i: (i, 0)),  # one f32 per row
    )

    q_block = pl.pallas_call(
        _critic_kernel,
        out_shape=jax.ShapeDtypeStruct((bp, 1), jnp.float32),
        grid_spec=grid_spec,
        compiler_params=pltpu.CompilerParams(
            # batch axis is embarrassingly parallel -> v7x shards tiles across
            # its 2 TensorCores; harmless on single-TC v5e/v6e.
            dimension_semantics=("parallel",),
            # few MiB actually used at tb<=2048; 32 MiB is safe on all gens.
            vmem_limit_bytes=32 * 1024 * 1024,
        ),
        cost_estimate=pl.CostEstimate(
            flops=int(flops), transcendentals=0,
            bytes_accessed=int(bytes_accessed)),
    )(x, a, w1x, w1a, b1, w2, b2, w3r, b3)

    # Layout plumbing only: contiguous slice of the (bp, 1) result.
    return q_block[:B, 0]


# --------------------------- pure-JAX reference ---------------------------- #
def _reference_forward(x, a, params):
    xa = jnp.concatenate([x, a], axis=-1)
    h = jnp.maximum(xa @ params["w1"] + params["b1"], 0.0)
    h = jnp.maximum(h @ params["w2"] + params["b2"], 0.0)
    q = h @ params["w3"] + params["b3"]
    return q[:, 0]


if __name__ == "__main__":
    key = jax.random.PRNGKey(0)
    k_x, k_a, k_x2, k_a2, k_par = jax.random.split(key, 5)

    batch = 8
    state_dim = 16       # representation output dim
    action_dim = 4       # action_space.shape[0]
    critic_hidden = (64, 64)

    x = jax.random.normal(k_x, (batch, state_dim), jnp.float32)
    a = jax.random.normal(k_a, (batch, action_dim), jnp.float32)

    params = init_critic_params(k_par, state_dim, action_dim, critic_hidden)
    packed_bf16 = pack_critic_params(params, state_dim)                    # default bf16
    packed_f32 = pack_critic_params(params, state_dim, compute_dtype=jnp.float32)

    ref = _reference_forward(x, a, params)

    # 1) default bf16 compute path (loose tolerance: bf16 matmul operands).
    fwd = jax.jit(functools.partial(critic_forward_pallas, block_b=2048))
    q_bf16 = fwd(x, a, packed_bf16)
    jax.block_until_ready(q_bf16)
    assert q_bf16.shape == (batch,)
    assert jnp.allclose(q_bf16, ref, atol=5e-2, rtol=5e-2), "bf16 path mismatch"

    # 2) f32 compute path (tight correctness check).
    q_f32 = fwd(x, a, packed_f32)
    jax.block_until_ready(q_f32)
    assert jnp.allclose(q_f32, ref, atol=1e-4, rtol=1e-4), "f32 path mismatch"

    # 3) multi-tile path: force several grid steps (even tile count, row pad).
    batch2 = 24
    x2 = jax.random.normal(k_x2, (batch2, state_dim), jnp.float32)
    a2 = jax.random.normal(k_a2, (batch2, action_dim), jnp.float32)
    fwd_tiled = jax.jit(functools.partial(critic_forward_pallas, block_b=8))
    q_tiled = fwd_tiled(x2, a2, packed_f32)
    jax.block_until_ready(q_tiled)
    ref2 = _reference_forward(x2, a2, params)
    assert q_tiled.shape == (batch2,)
    assert jnp.allclose(q_tiled, ref2, atol=1e-4, rtol=1e-4), "tiled path mismatch"

    print("KERNEL_OK")
</pallas_src>

<mosaic_0001>
module attributes {stable_mosaic.version = 11 : i64} {
  func.func @_critic_kernel(%arg0: i32, %arg1: memref<8x16xf32, #tpu.memory_space<vmem>>, %arg2: memref<8x4xf32, #tpu.memory_space<vmem>>, %arg3: memref<16x128xbf16, #tpu.memory_space<vmem>>, %arg4: memref<4x128xf32, #tpu.memory_space<vmem>>, %arg5: memref<1x128xf32, #tpu.memory_space<vmem>>, %arg6: memref<128x128xbf16, #tpu.memory_space<vmem>>, %arg7: memref<1x128xf32, #tpu.memory_space<vmem>>, %arg8: memref<1x128xf32, #tpu.memory_space<vmem>>, %arg9: memref<1x1xf32, #tpu.memory_space<vmem>>, %arg10: memref<8x1xf32, #tpu.memory_space<vmem>>) attributes {dimension_semantics = [#tpu.dimension_semantics<parallel>], iteration_bounds = array<i64: 1>, scalar_prefetch = 0 : i64, scratch_operands = 0 : i64, tpu.core_type = #tpu.core_type<tc>, window_params = [{transform_indices = @transform_0, window_bounds = array<i64: 8, 16>}, {transform_indices = @transform_1, window_bounds = array<i64: 8, 4>}, {pipeline_mode = #tpu.pipeline_mode<synchronous>, transform_indices = @transform_2, window_bounds = array<i64: 16, 128>}, {pipeline_mode = #tpu.pipeline_mode<synchronous>, transform_indices = @transform_3, window_bounds = array<i64: 4, 128>}, {pipeline_mode = #tpu.pipeline_mode<synchronous>, transform_indices = @transform_4, window_bounds = array<i64: 1, 128>}, {pipeline_mode = #tpu.pipeline_mode<synchronous>, transform_indices = @transform_5, window_bounds = array<i64: 128, 128>}, {pipeline_mode = #tpu.pipeline_mode<synchronous>, transform_indices = @transform_6, window_bounds = array<i64: 1, 128>}, {pipeline_mode = #tpu.pipeline_mode<synchronous>, transform_indices = @transform_7, window_bounds = array<i64: 1, 128>}, {pipeline_mode = #tpu.pipeline_mode<synchronous>, transform_indices = @transform_8, window_bounds = array<i64: 1, 1>}, {transform_indices = @transform_9, window_bounds = array<i64: 8, 1>}]} {
    %c0 = arith.constant 0 : index
    %c0_0 = arith.constant 0 : index
    %0 = vector.load %arg1[%c0, %c0_0] : memref<8x16xf32, #tpu.memory_space<vmem>>, vector<8x16xf32>
    %1 = arith.truncf %0 : vector<8x16xf32> to vector<8x16xbf16>
    %c0_1 = arith.constant 0 : index
    %c0_2 = arith.constant 0 : index
    %2 = vector.load %arg3[%c0_1, %c0_2] : memref<16x128xbf16, #tpu.memory_space<vmem>>, vector<16x128xbf16>
    %cst = arith.constant dense<0.000000e+00> : vector<8x128xf32>
    %3 = tpu.matmul %1, %2, %cst {dimension_numbers = #tpu.dot_dimension_numbers<[1], [0], [0], [1], [0, 0, 1, 1], [], []>} : vector<8x16xbf16>, vector<16x128xbf16>, vector<8x128xf32> -> vector<8x128xf32>
    %c0_3 = arith.constant 0 : index
    %c0_4 = arith.constant 0 : index
    %4 = vector.load %arg2[%c0_3, %c0_4] : memref<8x4xf32, #tpu.memory_space<vmem>>, vector<8x4xf32>
    %5 = vector.extract_strided_slice %4 {offsets = [0, 0], sizes = [8, 1], strides = [1, 1]} : vector<8x4xf32> to vector<8x1xf32>
    %c0_5 = arith.constant 0 : index
    %c0_6 = arith.constant 0 : index
    %6 = vector.load %arg4[%c0_5, %c0_6] : memref<4x128xf32, #tpu.memory_space<vmem>>, vector<1x128xf32>
    %7 = vector.broadcast %5 : vector<8x1xf32> to vector<8x128xf32>
    %8 = vector.broadcast %6 : vector<1x128xf32> to vector<8x128xf32>
    %9 = arith.mulf %7, %8 : vector<8x128xf32>
    %10 = arith.addf %3, %9 : vector<8x128xf32>
    %11 = vector.extract_strided_slice %4 {offsets = [0, 1], sizes = [8, 1], strides = [1, 1]} : vector<8x4xf32> to vector<8x1xf32>
    %c1 = arith.constant 1 : index
    %c0_7 = arith.constant 0 : index
    %12 = vector.load %arg4[%c1, %c0_7] : memref<4x128xf32, #tpu.memory_space<vmem>>, vector<1x128xf32>
    %13 = vector.broadcast %11 : vector<8x1xf32> to vector<8x128xf32>
    %14 = vector.broadcast %12 : vector<1x128xf32> to vector<8x128xf32>
    %15 = arith.mulf %13, %14 : vector<8x128xf32>
    %16 = arith.addf %10, %15 : vector<8x128xf32>
    %17 = vector.extract_strided_slice %4 {offsets = [0, 2], sizes = [8, 1], strides = [1, 1]} : vector<8x4xf32> to vector<8x1xf32>
    %c2 = arith.constant 2 : index
    %c0_8 = arith.constant 0 : index
    %18 = vector.load %arg4[%c2, %c0_8] : memref<4x128xf32, #tpu.memory_space<vmem>>, vector<1x128xf32>
    %19 = vector.broadcast %17 : vector<8x1xf32> to vector<8x128xf32>
    %20 = vector.broadcast %18 : vector<1x128xf32> to vector<8x128xf32>
    %21 = arith.mulf %19, %20 : vector<8x128xf32>
    %22 = arith.addf %16, %21 : vector<8x128xf32>
    %23 = vector.extract_strided_slice %4 {offsets = [0, 3], sizes = [8, 1], strides = [1, 1]} : vector<8x4xf32> to vector<8x1xf32>
    %c3 = arith.constant 3 : index
    %c0_9 = arith.constant 0 : index
    %24 = vector.load %arg4[%c3, %c0_9] : memref<4x128xf32, #tpu.memory_space<vmem>>, vector<1x128xf32>
    %25 = vector.broadcast %23 : vector<8x1xf32> to vector<8x128xf32>
    %26 = vector.broadcast %24 : vector<1x128xf32> to vector<8x128xf32>
    %27 = arith.mulf %25, %26 : vector<8x128xf32>
    %28 = arith.addf %22, %27 : vector<8x128xf32>
    %c0_10 = arith.constant 0 : index
    %c0_11 = arith.constant 0 : index
    %29 = vector.load %arg5[%c0_10, %c0_11] : memref<1x128xf32, #tpu.memory_space<vmem>>, vector<1x128xf32>
    %30 = vector.broadcast %29 : vector<1x128xf32> to vector<8x128xf32>
    %31 = arith.addf %28, %30 : vector<8x128xf32>
    %cst_12 = arith.constant 0.000000e+00 : f32
    %32 = vector.broadcast %cst_12 : f32 to vector<8x128xf32>
    %33 = arith.maximumf %31, %32 : vector<8x128xf32>
    %34 = arith.truncf %33 : vector<8x128xf32> to vector<8x128xbf16>
    %c0_13 = arith.constant 0 : index
    %c0_14 = arith.constant 0 : index
    %35 = vector.load %arg6[%c0_13, %c0_14] : memref<128x128xbf16, #tpu.memory_space<vmem>>, vector<128x128xbf16>
    %cst_15 = arith.constant dense<0.000000e+00> : vector<8x128xf32>
    %36 = tpu.matmul %34, %35, %cst_15 {dimension_numbers = #tpu.dot_dimension_numbers<[1], [0], [0], [1], [0, 0, 1, 1], [], []>} : vector<8x128xbf16>, vector<128x128xbf16>, vector<8x128xf32> -> vector<8x128xf32>
    %c0_16 = arith.constant 0 : index
    %c0_17 = arith.constant 0 : index
    %37 = vector.load %arg7[%c0_16, %c0_17] : memref<1x128xf32, #tpu.memory_space<vmem>>, vector<1x128xf32>
    %38 = vector.broadcast %37 : vector<1x128xf32> to vector<8x128xf32>
    %39 = arith.addf %36, %38 : vector<8x128xf32>
    %cst_18 = arith.constant 0.000000e+00 : f32
    %40 = vector.broadcast %cst_18 : f32 to vector<8x128xf32>
    %41 = arith.maximumf %39, %40 : vector<8x128xf32>
    %c0_19 = arith.constant 0 : index
    %c0_20 = arith.constant 0 : index
    %42 = vector.load %arg8[%c0_19, %c0_20] : memref<1x128xf32, #tpu.memory_space<vmem>>, vector<1x128xf32>
    %43 = vector.broadcast %42 : vector<1x128xf32> to vector<8x128xf32>
    %44 = arith.mulf %41, %43 : vector<8x128xf32>
    %cst_21 = arith.constant dense<0.000000e+00> : vector<8xf32>
    %45 = vector.multi_reduction <add>, %44, %cst_21 [1] : vector<8x128xf32> to vector<8xf32>
    %46 = vector.shape_cast %45 : vector<8xf32> to vector<8x1xf32>
    %c0_22 = arith.constant 0 : index
    %c0_23 = arith.constant 0 : index
    %47 = vector.load %arg9[%c0_22, %c0_23] : memref<1x1xf32, #tpu.memory_space<vmem>>, vector<1x1xf32>
    %48 = vector.broadcast %47 : vector<1x1xf32> to vector<8x1xf32>
    %49 = arith.addf %46, %48 : vector<8x1xf32>
    %c0_24 = arith.constant 0 : index
    %c0_25 = arith.constant 0 : index
    %50 = vector.load %arg10[%c0_24, %c0_25] : memref<8x1xf32, #tpu.memory_space<vmem>>, vector<8x1xf32>
    tpu.vector_store %arg10[%c0_24, %c0_25], %49 {strides = array<i32>} : memref<8x1xf32, #tpu.memory_space<vmem>>, vector<8x1xf32>,
    return
  }
  func.func @transform_0(%arg0: i32) -> (i32, i32) {
    %c0_i32 = arith.constant 0 : i32
    %c0_i32_0 = arith.constant 0 : i32
    return %arg0, %c0_i32 : i32, i32
  }
  func.func @transform_1(%arg0: i32) -> (i32, i32) {
    %c0_i32 = arith.constant 0 : i32
    %c0_i32_0 = arith.constant 0 : i32
    return %arg0, %c0_i32 : i32, i32
  }
  func.func @transform_2(%arg0: i32) -> (i32, i32) {
    %c0_i32 = arith.constant 0 : i32
    %c0_i32_0 = arith.constant 0 : i32
    %c0_i32_1 = arith.constant 0 : i32
    return %c0_i32, %c0_i32_0 : i32, i32
  }
  func.func @transform_3(%arg0: i32) -> (i32, i32) {
    %c0_i32 = arith.constant 0 : i32
    %c0_i32_0 = arith.constant 0 : i32
    %c0_i32_1 = arith.constant 0 : i32
    return %c0_i32, %c0_i32_0 : i32, i32
  }
  func.func @transform_4(%arg0: i32) -> (i32, i32) {
    %c0_i32 = arith.constant 0 : i32
    %c0_i32_0 = arith.constant 0 : i32
    %c0_i32_1 = arith.constant 0 : i32
    return %c0_i32, %c0_i32_0 : i32, i32
  }
  func.func @transform_5(%arg0: i32) -> (i32, i32) {
    %c0_i32 = arith.constant 0 : i32
    %c0_i32_0 = arith.constant 0 : i32
    %c0_i32_1 = arith.constant 0 : i32
    return %c0_i32, %c0_i32_0 : i32, i32
  }
  func.func @transform_6(%arg0: i32) -> (i32, i32) {
    %c0_i32 = arith.constant 0 : i32
    %c0_i32_0 = arith.constant 0 : i32
    %c0_i32_1 = arith.constant 0 : i32
    return %c0_i32, %c0_i32_0 : i32, i32
  }
  func.func @transform_7(%arg0: i32) -> (i32, i32) {
    %c0_i32 = arith.constant 0 : i32
    %c0_i32_0 = arith.constant 0 : i32
    %c0_i32_1 = arith.constant 0 : i32
    return %c0_i32, %c0_i32_0 : i32, i32
  }
  func.func @transform_8(%arg0: i32) -> (i32, i32) {
    %c0_i32 = arith.constant 0 : i32
    %c0_i32_0 = arith.constant 0 : i32
    %c0_i32_1 = arith.constant 0 : i32
    return %c0_i32, %c0_i32_0 : i32, i32
  }
  func.func @transform_9(%arg0: i32) -> (i32, i32) {
    %c0_i32 = arith.constant 0 : i32
    %c0_i32_0 = arith.constant 0 : i32
    return %arg0, %c0_i32 : i32, i32
  }
}

</mosaic_0001>

<llo_original>
// kernel: critic_forward_pallas.1
$region0: #{critic_forward_pallas.1}
  #allocation0 [shape = 'u32[]', space=smem, size = 0x4, offset = 0x4, fixed_abs, tag = 'smem constant byte address 0x4 - core index']
  #allocation1 [shape = 'u32[144,128]{1,0:T(1,128)}', space=vmem, size = 0x12000, scoped, tag = 'internal scratch']
  #allocation2 [shape = 'f32[1,1]{1,0:T(1,128)S(1)}', space=vmem, size = 0x200, scoped, tag = 'scoped memory for critic_forward_pallas.1']
  %s0 = inlined_call_operand.vmem [shape: f32[8,16], index: 0, kind: input, shape index: {}]
  %s1 = inlined_call_operand.vmem [shape: f32[8,4], index: 1, kind: input, shape index: {}]
  %s2 = inlined_call_operand.vmem [shape: bf16[16,128], index: 2, kind: input, shape index: {}]
  %s3 = inlined_call_operand.vmem [shape: f32[4,128], index: 3, kind: input, shape index: {}]
  %s4 = inlined_call_operand.vmem [shape: f32[1,128], index: 4, kind: input, shape index: {}]
  %s5 = inlined_call_operand.hbm [shape: bf16[128,128], index: 5, kind: input, shape index: {}]
  %s6 = inlined_call_operand.vmem [shape: f32[1,128], index: 6, kind: input, shape index: {}]
  %s7 = inlined_call_operand.vmem [shape: f32[1,128], index: 7, kind: input, shape index: {}]
  %s8 = inlined_call_operand.<no memory space> [shape: f32[1,1], index: 8, kind: input, shape index: {}]
  %s9 = inlined_call_operand.vmem [shape: f32[8,1], index: 9, kind: output, shape index: {}]
  %s10 = sld [smem:[#allocation0]]
  $region50: #{critic_forward_pallas.1} parent=0
    _
  %s12 = ssub.s32 1, %s10
  %s13 = scalar_select 0, %s12, %s10
  %v14 = vstv %s8
  %15 = vst [vmem:[#allocation2] sm:$0x1] %v14
  $region1: #{critic_forward_pallas.1} parent=0
    #allocation3 [shape = 'u8[32768]{0}', space=vmem, size = 0x8000, scoped, tag = 'input window, operand 5, single buffered']
    #allocation4 [shape = 's32[1]{0}', space=sflag, size = 0x4, scoped, tag = 'scoped memory for critic_forward_pallas.1']
    %16 = vsyncpa [#allocation4], 0
    // Predicated region
    $region2: #{critic_forward_pallas.1} parent=1 // pred_check
      _
    $region3: #{critic_forward_pallas.1} parent=1 // pred_check_branch
      %18 = sbr.rel (0) target = $region5
    $region4: #{critic_forward_pallas.1} parent=1 // pred_region
      _
    $region5: #{critic_forward_pallas.1} parent=1 // pred_fallthru
      _
    // Predicated region
    $region6: #{critic_forward_pallas.1} parent=1 // pred_check
      _
    $region7: #{critic_forward_pallas.1} parent=1 // pred_check_branch
      %20 = sbr.rel (0) target = $region9
    $region8: #{critic_forward_pallas.1} parent=1 // pred_region
      _
    $region9: #{critic_forward_pallas.1} parent=1 // pred_fallthru
      _
    // Predicated region
    $region10: #{critic_forward_pallas.1} parent=1 // pred_check
      _
    $region11: #{critic_forward_pallas.1} parent=1 // pred_check_branch
      %22 = sbr.rel (0) target = $region13
    $region12: #{critic_forward_pallas.1} parent=1 // pred_region
      _
    $region13: #{critic_forward_pallas.1} parent=1 // pred_fallthru
      _
    // Predicated region
    $region14: #{critic_forward_pallas.1} parent=1 // pred_check
      _
    $region15: #{critic_forward_pallas.1} parent=1 // pred_check_branch
      %24 = sbr.rel (0) target = $region17
    $region16: #{critic_forward_pallas.1} parent=1 // pred_region
      _
    $region17: #{critic_forward_pallas.1} parent=1 // pred_fallthru
      _
    // Predicated region
    $region18: #{critic_forward_pallas.1} parent=1 // pred_check
      _
    $region19: #{critic_forward_pallas.1} parent=1 // pred_check_branch
      %26 = sbr.rel (0) target = $region21
    $region20: #{critic_forward_pallas.1} parent=1 // pred_region
      _
    $region21: #{critic_forward_pallas.1} parent=1 // pred_fallthru
      _
    // Predicated region
    $region22: #{critic_forward_pallas.1} parent=1 // pred_check
      _
    $region23: #{critic_forward_pallas.1} parent=1 // pred_check_branch
      %28 = sbr.rel (0) target = $region25
    $region24: #{critic_forward_pallas.1} parent=1 // pred_region
      %s30 = ssub.s32 1024, 1024
      %31 = vsyncadd [#allocation4], %s30
      %s32 = sshll.u32 [#allocation3], 4
      %s33 = int_to_ptr.vmem [resolvable:$true] %s32
      %38 = dma.hbm_to_vmem [thread:$0]  %s5, 1024, %s33, [#allocation4], 64, 64, 4
    $region25: #{critic_forward_pallas.1} parent=1 // pred_fallthru
      _
    // Predicated region
    $region26: #{critic_forward_pallas.1} parent=1 // pred_check
      _
    $region27: #{critic_forward_pallas.1} parent=1 // pred_check_branch
      %40 = sbr.rel (0) target = $region29
    $region28: #{critic_forward_pallas.1} parent=1 // pred_region
      _
    $region29: #{critic_forward_pallas.1} parent=1 // pred_fallthru
      _
    // Predicated region
    $region30: #{critic_forward_pallas.1} parent=1 // pred_check
      _
    $region31: #{critic_forward_pallas.1} parent=1 // pred_check_branch
      %42 = sbr.rel (0) target = $region33
    $region32: #{critic_forward_pallas.1} parent=1 // pred_region
      _
    $region33: #{critic_forward_pallas.1} parent=1 // pred_fallthru
      _
    // Predicated region
    $region34: #{critic_forward_pallas.1} parent=1 // pred_check
      _
    $region35: #{critic_forward_pallas.1} parent=1 // pred_check_branch
      %44 = sbr.rel (0) target = $region37
    $region36: #{critic_forward_pallas.1} parent=1 // pred_region
      _
    $region37: #{critic_forward_pallas.1} parent=1 // pred_fallthru
      _
    // Predicated region
    $region38: #{critic_forward_pallas.1} parent=1 // pred_check
      _
    $region39: #{critic_forward_pallas.1} parent=1 // pred_check_branch
      %46 = sbr.rel (0) target = $region41
    $region40: #{critic_forward_pallas.1} parent=1 // pred_region
      %47 = dma.done [#allocation4], 1024
    $region41: #{critic_forward_pallas.1} parent=1 // pred_fallthru
      _
    %v49 = vld [vmem:[%s0] sm:$0xff]
    %v50 = vpack.c.bf16 %v49, %v49
    %v51 = vld [vmem:[%s2] sm:$0xf]
    %v52 = vld [vmem:[%s2 + $0x4] sm:$0xf]
    %v53 = vld [vmem:[%s1] sm:$0xff]
    %v54 = vld [vmem:[%s3] sm:$0x1]
    %56 = vset.pattern.permute.xlu0 0
    %57 = vperm.xlu0 %56, %v53
    %v58 = vpop.permute.xlu0 %57
    %v60 = vlaneseq
    %v61 = vshrl.u32 %v60, 7
    %v62 = vsub.s32 0, %v61
    %v63 = vrot.slane %v54, %v62
    %v64 = vmul.f32 %v58, %v63
    %v67 = vunpack.c.l.b16 %v51
    %v68 = vunpack.c.l.b16 %v52
    %v69 = vpack.c.b16 %v68, %v67
    %vm71 = vcmask 130048
    %v73 = vsel %vm71, %v50, 0
    %75 = vmatprep.subr.bf16.mxu0 0
    %76 = vmatpush1.bf16.msra.mxu0 %v69
    %77 = vmatprep.subr.bf16.mxu0 0
    %78 = vmatpush1.bf16.msra.mxu0 0
    %79 = vmatprep.subr.bf16.mxu0 0
    %80 = vmatpush1.bf16.msra.mxu0 0
    %81 = vmatprep.subr.bf16.mxu0 0
    %82 = vmatpush1.bf16.msra.mxu0 0
    %83 = vmatprep.subr.bf16.mxu0 0
    %84 = vmatpush1.bf16.msra.mxu0 0
    %85 = vmatprep.subr.bf16.mxu0 0
    %86 = vmatpush1.bf16.msra.mxu0 0
    %87 = vmatprep.subr.bf16.mxu0 0
    %88 = vmatpush1.bf16.msra.mxu0 0
    %89 = vmatprep.subr.bf16.mxu0 0
    %90 = vmatpush1.bf16.msra.mxu0 0
    %91 = vmatprep.subr.bf16.mxu0 0
    %92 = vmatpush1.bf16.msra.mxu0 0
    %93 = vmatprep.subr.bf16.mxu0 0
    %94 = vmatpush1.bf16.msra.mxu0 0
    %95 = vmatprep.subr.bf16.mxu0 0
    %96 = vmatpush1.bf16.msra.mxu0 0
    %97 = vmatprep.subr.bf16.mxu0 0
    %98 = vmatpush1.bf16.msra.mxu0 0
    %99 = vmatprep.subr.bf16.mxu0 0
    %100 = vmatpush1.bf16.msra.mxu0 0
    %101 = vmatprep.subr.bf16.mxu0 0
    %102 = vmatpush1.bf16.msra.mxu0 0
    %103 = vmatprep.subr.bf16.mxu0 0
    %104 = vmatpush1.bf16.msra.mxu0 0
    %105 = vmatprep.subr.bf16.mxu0 0
    %106 = vmatpush1.bf16.msra.mxu0 0
    %107 = vmatprep.mubr.bf16.mxu0 0
    %108 = vmatmul.mubr.bf16.gmra.mrb[0].mxu0 %v73
    %v109 = vpop.f32.mrb[0].mxu0
    %v110 = vadd.f32 %v64, %v109
    %v111 = vpop.f32.mrb[0].mxu0
    %v112 = vpop.f32.mrb[0].mxu0
    %v113 = vpop.f32.mrb[0].mxu0
    %114 = vdwg.mxu0
    %v115 = vld [vmem:[%s3 + $0x1] sm:$0x1]
    %116 = vset.pattern.permute.xlu0 1
    %117 = vperm.xlu0 %116, %v53
    %v118 = vpop.permute.xlu0 %117
    %v120 = vlaneseq
    %v121 = vshrl.u32 %v120, 7
    %v122 = vsub.s32 0, %v121
    %v123 = vrot.slane %v115, %v122
    %v124 = vmul.f32 %v118, %v123
    %v125 = vadd.f32 %v110, %v124
    %v126 = vld [vmem:[%s3 + $0x2] sm:$0x1]
    %127 = vset.pattern.permute.xlu0 2
    %128 = vperm.xlu0 %127, %v53
    %v129 = vpop.permute.xlu0 %128
    %v131 = vlaneseq
    %v132 = vshrl.u32 %v131, 7
    %v133 = vsub.s32 0, %v132
    %v134 = vrot.slane %v126, %v133
    %v135 = vmul.f32 %v129, %v134
    %v136 = vadd.f32 %v125, %v135
    %v137 = vld [vmem:[%s3 + $0x3] sm:$0x1]
    %138 = vset.pattern.permute.xlu0 3
    %139 = vperm.xlu0 %138, %v53
    %v140 = vpop.permute.xlu0 %139
    %v142 = vlaneseq
    %v143 = vshrl.u32 %v142, 7
    %v144 = vsub.s32 0, %v143
    %v145 = vrot.slane %v137, %v144
    %v146 = vmul.f32 %v140, %v145
    %v147 = vadd.f32 %v136, %v146
    %v148 = vld [vmem:[%s4] sm:$0x1]
    %v150 = vlaneseq
    %v151 = vshrl.u32 %v150, 7
    %v152 = vsub.s32 0, %v151
    %v153 = vrot.slane %v148, %v152
    %v155 = vadd.f32 %v147, %v153
    %v156 = vmax.f32 %v155, 0.0
    %v157 = vpack.c.bf16 %v156, %v156
    %v158 = vld [vmem:[#allocation3] sm:$0xf]
    %v159 = vld [vmem:[#allocation3 + $0x4] sm:$0xf]
    %v160 = vld [vmem:[#allocation3 + $0x8] sm:$0xf]
    %v161 = vld [vmem:[#allocation3 + $0xc] sm:$0xf]
    %v162 = vld [vmem:[#allocation3 + $0x10] sm:$0xf]
    %v163 = vld [vmem:[#allocation3 + $0x14] sm:$0xf]
    %v164 = vld [vmem:[#allocation3 + $0x18] sm:$0xf]
    %v165 = vld [vmem:[#allocation3 + $0x1c] sm:$0xf]
    %v166 = vld [vmem:[#allocation3 + $0x20] sm:$0xf]
    %v167 = vld [vmem:[#allocation3 + $0x24] sm:$0xf]
    %v168 = vld [vmem:[#allocation3 + $0x28] sm:$0xf]
    %v169 = vld [vmem:[#allocation3 + $0x2c] sm:$0xf]
    %v170 = vld [vmem:[#allocation3 + $0x30] sm:$0xf]
    %v171 = vld [vmem:[#allocation3 + $0x34] sm:$0xf]
    %v172 = vld [vmem:[#allocation3 + $0x38] sm:$0xf]
    %v173 = vld [vmem:[#allocation3 + $0x3c] sm:$0xf]
    %v174 = vld [vmem:[%s6] sm:$0x1]
    %v176 = vlaneseq
    %v177 = vshrl.u32 %v176, 7
    %v178 = vsub.s32 0, %v177
    %v179 = vrot.slane %v174, %v178
    %v197 = vunpack.c.l.b16 %v158
    %v198 = vunpack.c.l.b16 %v159
    %v199 = vunpack.c.l.b16 %v160
    %v200 = vunpack.c.l.b16 %v161
    %v201 = vunpack.c.l.b16 %v162
    %v202 = vunpack.c.l.b16 %v163
    %v203 = vunpack.c.l.b16 %v164
    %v204 = vunpack.c.l.b16 %v165
    %v205 = vunpack.c.l.b16 %v166
    %v206 = vunpack.c.l.b16 %v167
    %v207 = vunpack.c.l.b16 %v168
    %v208 = vunpack.c.l.b16 %v169
    %v209 = vunpack.c.l.b16 %v170
    %v210 = vunpack.c.l.b16 %v171
    %v211 = vunpack.c.l.b16 %v172
    %v212 = vunpack.c.l.b16 %v173
    %v213 = vpack.c.b16 %v198, %v197
    %v214 = vpack.c.b16 %v200, %v199
    %v215 = vpack.c.b16 %v202, %v201
    %v216 = vpack.c.b16 %v204, %v203
    %v217 = vpack.c.b16 %v206, %v205
    %v218 = vpack.c.b16 %v208, %v207
    %v219 = vpack.c.b16 %v210, %v209
    %v220 = vpack.c.b16 %v212, %v211
    %229 = vmatprep.subr.bf16.mxu0 0
    %230 = vmatpush1.bf16.msra.mxu0 %v213
    %231 = vmatprep.subr.bf16.mxu0 0
    %232 = vmatpush1.bf16.msra.mxu0 %v214
    %233 = vmatprep.subr.bf16.mxu0 0
    %234 = vmatpush1.bf16.msra.mxu0 %v215
    %235 = vmatprep.subr.bf16.mxu0 0
    %236 = vmatpush1.bf16.msra.mxu0 %v216
    %237 = vmatprep.subr.bf16.mxu0 0
    %238 = vmatpush1.bf16.msra.mxu0 %v217
    %239 = vmatprep.subr.bf16.mxu0 0
    %240 = vmatpush1.bf16.msra.mxu0 %v218
    %241 = vmatprep.subr.bf16.mxu0 0
    %242 = vmatpush1.bf16.msra.mxu0 %v219
    %243 = vmatprep.subr.bf16.mxu0 0
    %244 = vmatpush1.bf16.msra.mxu0 %v220
    %245 = vmatprep.subr.bf16.mxu0 0
    %246 = vmatpush1.bf16.msra.mxu0 0
    %247 = vmatprep.subr.bf16.mxu0 0
    %248 = vmatpush1.bf16.msra.mxu0 0
    %249 = vmatprep.subr.bf16.mxu0 0
    %250 = vmatpush1.bf16.msra.mxu0 0
    %251 = vmatprep.subr.bf16.mxu0 0
    %252 = vmatpush1.bf16.msra.mxu0 0
    %253 = vmatprep.subr.bf16.mxu0 0
    %254 = vmatpush1.bf16.msra.mxu0 0
    %255 = vmatprep.subr.bf16.mxu0 0
    %256 = vmatpush1.bf16.msra.mxu0 0
    %257 = vmatprep.subr.bf16.mxu0 0
    %258 = vmatpush1.bf16.msra.mxu0 0
    %259 = vmatprep.subr.bf16.mxu0 0
    %260 = vmatpush1.bf16.msra.mxu0 0
    %261 = vmatprep.mubr.bf16.mxu0 0
    %262 = vmatmul.mubr.bf16.gmra.mrb[0].mxu0 %v157
    %v263 = vpop.f32.mrb[0].mxu0
    %v264 = vadd.f32 %v179, %v263
    %v265 = vpop.f32.mrb[0].mxu0
    %v266 = vpop.f32.mrb[0].mxu0
    %v267 = vpop.f32.mrb[0].mxu0
    %268 = vdwg.mxu0
    %v269 = vmax.f32 %v264, 0.0
    %v270 = vld [vmem:[%s7] sm:$0x1]
    %v272 = vlaneseq
    %v273 = vshrl.u32 %v272, 7
    %v274 = vsub.s32 0, %v273
    %v275 = vrot.slane %v270, %v274
    %v277 = vmul.f32 %v269, %v275
    %278 = vadd.xlane.f32.xlu0 %v277
    %v279 = vpop.xlane.xlu0 %278
    %v280 = vld [vmem:[#allocation2] sm:$0x1]
    %v282 = vlaneseq
    %v283 = vshrl.u32 %v282, 7
    %v284 = vsub.s32 0, %v283
    %v285 = vrot.slane %v280, %v284
    %v287 = vadd.f32 %v279, %v285
    %vm288 = vcmask 7168
    %289 = vst.msk [vmem:[%s9] sm:$0xff] %vm288, %v287
    // Predicated region
    $region42: #{critic_forward_pallas.1} parent=1 // pred_check
      _
    $region43: #{critic_forward_pallas.1} parent=1 // pred_check_branch
      %291 = sbr.rel (0) target = $region45
    $region44: #{critic_forward_pallas.1} parent=1 // pred_region
      _
    $region45: #{critic_forward_pallas.1} parent=1 // pred_fallthru
      _
    // Predicated region
    $region46: #{critic_forward_pallas.1} parent=1 // pred_check
      _
    $region47: #{critic_forward_pallas.1} parent=1 // pred_check_branch
      %293 = sbr.rel (0) target = $region49
    $region48: #{critic_forward_pallas.1} parent=1 // pred_region
      _
    $region49: #{critic_forward_pallas.1} parent=1 // pred_fallthru
      _
    %294 = vsyncpa [#allocation4], 1

</llo_original>
